<compile_context>
chip_gen: v6e
topology: v6e:2x2x1
jax: 0.10.0
libtpu: 0.0.40
codegen_flags: <defaults>
</compile_context>

<pallas_src>
import functools

import jax
import jax.numpy as jnp
from jax.experimental import pallas as pl
from jax.experimental.pallas import tpu as pltpu


# ----------------------------------------------------------------------------
# tiling / VMEM helpers
# ----------------------------------------------------------------------------
def _pick_row_tile(n):
    for t in (512, 256, 128):
        if n % t == 0:
            return t
    return n


def _chunk_width(ncols):
    # Lane-chunk width for building/storing the flat e block (multiple of 128).
    for cw in (1024, 512, 256, 128):
        if ncols % cw == 0:
            return cw
    return ncols


def _pad_bytes(rows, cols, itemsize=4):
    r = ((rows + 7) // 8) * 8
    c = ((cols + 127) // 128) * 128
    return r * c * itemsize


def _vmem_budget():
    """(tile-picker budget, vmem_limit_bytes) -- generation aware."""
    try:
        cap = int(pltpu.get_tpu_info().vmem_capacity_bytes)
    except Exception:
        cap = 64 * 1024 * 1024          # conservative (v7x per-TensorCore)
    limit = min((3 * cap) // 4, 100 * 1024 * 1024)   # ~48 MiB on v7x, ~96 MiB on v5e/v6e
    return int(0.8 * limit), limit


def _attn_vmem_bytes(t, hd):
    """Accounting for the attention kernel at node tile t (double buffers included)."""
    c = t * hd
    cw = _chunk_width(c)
    b = 0
    b += 2 * _pad_bytes(t, c)            # e_out block (lane dense), double buffered
    b += 2 * _pad_bytes(t, t)            # adj block
    b += 3 * 2 * _pad_bytes(t, hd)       # q, k, v blocks (lane padded 16->128)
    b += 2 * _pad_bytes(1, c)            # flattened q row
    b += 2 * _pad_bytes(t, c)            # T_a one-hot (resident, counted x2 to be safe)
    b += 2 * _pad_bytes(hd, c)           # T_k one-hot
    b += 2 * _pad_bytes(t, hd)           # h_out block
    b += 2 * _pad_bytes(t, hd)           # wV / z scratch accumulators
    b += 3 * _pad_bytes(t, cw)           # e-path per-chunk temporaries
    b += 5 * _pad_bytes(t, t)            # adjT / logits / s temporaries
    return b


def _pick_node_tile(n, hd, budget_bytes):
    # Node tiles sit on both sublane and lane axes of the adjacency block, so they
    # must be multiples of 128 (or cover the whole dimension).
    cands = [t for t in (512, 384, 256, 128) if n % t == 0]
    if not cands:
        return n                          # small / odd graphs: one full-extent tile
    fitting = [t for t in cands if _attn_vmem_bytes(t, hd) <= budget_bytes]
    if not fitting:
        return cands[-1]                  # smallest legal tile; see head-tiling TODO above
    multi = [t for t in fitting if n // t >= 2]   # keep >=2 dst tiles for v7x's 2 TCs
    return multi[0] if multi else fitting[0]


# ----------------------------------------------------------------------------
# Kernel 1: fused Q|K|V projection, row-tiled, weight resident in VMEM
# ----------------------------------------------------------------------------
def _proj_kernel(h_ref, w_ref, b_ref, qkv_ref):
    # h_ref: (tm, in_dim), w_ref: (in_dim, 3*H*D), b_ref: (1, 3*H*D) -> one fused slab.
    qkv_ref[...] = (
        jnp.dot(h_ref[...], w_ref[...], preferred_element_type=jnp.float32) + b_ref[...]
    )


# ----------------------------------------------------------------------------
# Kernel 2: graph attention, tiled over (dst tiles "parallel", src tiles "arbitrary")
# ----------------------------------------------------------------------------
def _attn_kernel(adj_ref, q_ref, k_ref, v_ref, q2_ref, ta_ref, tk_ref,
                 eout_ref, hout_ref, wv_ref, zw_ref,
                 *, num_heads, head_dim):
    ui = pl.program_id(1)                       # src-tile index (reduction axis)
    H, D = num_heads, head_dim
    HD = H * D
    scale = 1.0 / (float(D) ** 0.5)

    @pl.when(ui == 0)
    def _():
        wv_ref[...] = jnp.zeros_like(wv_ref)
        zw_ref[...] = jnp.zeros_like(zw_ref)

    adj_blk = adj_ref[...]                       # (tu, tv)  src-major mask
    qf = q_ref[...]                              # (tv, HD)  Q_h of dst nodes
    kf = k_ref[...]                              # (tu, HD)  K_h of src nodes
    vf = v_ref[...]                              # (tu, HD)  V_h of src nodes

    # ---- e_out block: flat (tu, tv*HD), lane-dense, built in lane chunks -------------
    # e[u, v*HD + j] = adj[u, v] * K[u, j] * scale * Q[v, j]
    #   adj repeat over HD  -> adj_blk @ T_a   (one-hot, MXU, exact)
    #   K tiled over v      -> kf     @ T_k   (one-hot * scale, MXU)
    #   Q flattened row     -> broadcast over sublanes (free)
    ncols = eout_ref.shape[-1]
    cw = _chunk_width(ncols)
    qrow = q2_ref[0]                             # (1, tv*HD)
    for c0 in range(0, ncols, cw):
        a_rep = jnp.dot(adj_blk, ta_ref[:, c0:c0 + cw],
                        preferred_element_type=jnp.float32)          # (tu, cw)
        k_rep = jnp.dot(kf, tk_ref[:, c0:c0 + cw],
                        preferred_element_type=jnp.float32)          # (tu, cw)
        eout_ref[:, c0:c0 + cw] = a_rep * k_rep * qrow[:, c0:c0 + cw]

    # ---- aggregation: per-head MXU matmuls, full-width head masks, dst-major ---------
    adjT = adj_blk.T                             # (tv, tu) dst-major mask (XLU, in-kernel)
    head_of_col = jax.lax.broadcasted_iota(jnp.int32, (1, HD), 1) // D
    for hh in range(H):
        m01 = (head_of_col == hh).astype(jnp.float32)                # (1, HD) head mask
        kh = kf * (m01 * scale)                                      # masked + scaled K
        # logits[v, u] = sum_d Q[v,h,d] * K[u,h,d] / sqrt(D)   (MXU, contraction over HD)
        logits = jax.lax.dot_general(qf, kh, (((1,), (1,)), ((), ())),
                                     preferred_element_type=jnp.float32)   # (tv, tu)
        s = jnp.exp(jnp.clip(logits, -5.0, 5.0)) * adjT              # edge-only weights
        sv = jnp.dot(s, vf, preferred_element_type=jnp.float32)      # (tv, HD)
        wv_ref[...] += sv * m01                                      # head-h columns only
        zw_ref[...] += jnp.sum(s, axis=-1, keepdims=True) * m01      # z, already D-wide

    @pl.when(ui == pl.num_programs(1) - 1)
    def _():
        hout_ref[...] = wv_ref[...] / (zw_ref[...] + 1e-6)           # exact division


# ----------------------------------------------------------------------------
# Wrapper
# ----------------------------------------------------------------------------
def multi_head_attention_layer(adj, h, e, params, num_heads, out_dim):
    """Forward pass of MultiHeadAttentionLayer.

    adj : (N, N)      dense adjacency (u -> v)
    h   : (N, in_dim) node features
    e   : edge features -- accepted but unused (the reference forward never uses
                           `e` / `proj_e`)
    returns (h_out (N, H, D), e_out (N, N, H, D))
    """
    del e  # unused, exactly as in the reference forward
    N, in_dim = h.shape
    H, D = num_heads, out_dim
    HD = H * D

    adj = adj.astype(jnp.float32)
    budget, vmem_limit = _vmem_budget()

    # --- fused Q|K|V projection: one (tm, 3*HD) slab, split outside -----------------
    w_qkv = params["Wqkv"]                      # (in_dim, 3*H*D), concatenated at init
    b_qkv = params["bqkv"][None, :]             # (1, 3*H*D)
    tm = _pick_row_tile(N)
    qkv = pl.pallas_call(
        _proj_kernel,
        out_shape=jax.ShapeDtypeStruct((N, 3 * HD), jnp.float32),
        grid_spec=pltpu.PrefetchScalarGridSpec(
            num_scalar_prefetch=0,
            grid=(N // tm,),
            in_specs=[
                pl.BlockSpec((tm, in_dim), lambda i: (i, 0)),       # h rows (pipelined)
                pl.BlockSpec((in_dim, 3 * HD), lambda i: (0, 0)),   # weight (resident)
                pl.BlockSpec((1, 3 * HD), lambda i: (0, 0)),        # bias   (resident)
            ],
            out_specs=pl.BlockSpec((tm, 3 * HD), lambda i: (i, 0)),
        ),
        compiler_params=pltpu.CompilerParams(
            dimension_semantics=("parallel",),
            vmem_limit_bytes=vmem_limit,
        ),
    )(h.astype(jnp.float32), w_qkv, b_qkv)
    q = qkv[:, :HD]
    k = qkv[:, HD:2 * HD]
    v = qkv[:, 2 * HD:]

    # --- graph attention --------------------------------------------------------------
    t = _pick_node_tile(N, HD, budget)
    n_t = N // t
    C = t * HD                                  # lane-dense e_out block width
    grid = (n_t, n_t)                           # (dst tiles, src tiles)

    # Flattened Q rows per dst tile (pure metadata reshape of a small array).
    q2 = q.reshape(n_t, 1, C)

    # Constant one-hot expansion matrices (read once, resident in VMEM).
    scale = 1.0 / (float(D) ** 0.5)
    col = jnp.arange(C, dtype=jnp.int32)
    ta = (col[None, :] // HD == jnp.arange(t, dtype=jnp.int32)[:, None]).astype(jnp.float32)
    tk = ((col[None, :] % HD) == jnp.arange(HD, dtype=jnp.int32)[:, None]).astype(
        jnp.float32) * scale

    e_flat, h_flat = pl.pallas_call(
        functools.partial(_attn_kernel, num_heads=H, head_dim=D),
        out_shape=(
            jax.ShapeDtypeStruct((N, N * HD), jnp.float32),   # e_out, flat lane-dense layout
            jax.ShapeDtypeStruct((N, HD), jnp.float32),       # h_out, flat layout
        ),
        grid_spec=pltpu.PrefetchScalarGridSpec(
            num_scalar_prefetch=0,
            grid=grid,
            in_specs=[
                pl.BlockSpec((t, t), lambda vi, ui: (ui, vi)),        # adj  (src, dst)
                pl.BlockSpec((t, HD), lambda vi, ui: (vi, 0)),        # Q rows of dst
                pl.BlockSpec((t, HD), lambda vi, ui: (ui, 0)),        # K rows of src
                pl.BlockSpec((t, HD), lambda vi, ui: (ui, 0)),        # V rows of src
                pl.BlockSpec((1, 1, C), lambda vi, ui: (vi, 0, 0)),   # flat Q row of dst
                pl.BlockSpec((t, C), lambda vi, ui: (0, 0)),          # T_a one-hot (resident)
                pl.BlockSpec((HD, C), lambda vi, ui: (0, 0)),         # T_k one-hot (resident)
            ],
            out_specs=[
                pl.BlockSpec((t, C), lambda vi, ui: (ui, vi)),        # e_out flat block
                pl.BlockSpec((t, HD), lambda vi, ui: (vi, 0)),        # h_out (accumulated)
            ],
            scratch_shapes=[
                pltpu.VMEM((t, HD), jnp.float32),    # wV accumulator
                pltpu.VMEM((t, HD), jnp.float32),    # z accumulator (already D-wide)
            ],
        ),
        compiler_params=pltpu.CompilerParams(
            dimension_semantics=("parallel", "arbitrary"),
            vmem_limit_bytes=vmem_limit,
        ),
    )(adj, q, k, v, q2, ta, tk)

    # Free metadata reshapes (trailing dims contiguous) -- no HBM transposes.
    h_out = h_flat.reshape(N, H, D)
    e_out = e_flat.reshape(N, N, H, D)
    return h_out, e_out


# ----------------------------------------------------------------------------
# Parameter init (nn.Linear(in_dim, out_dim*num_heads, bias=True)); weights are
# stored transposed (in_dim, H*D) so y = x @ W + b.  The fused Q|K|V weight is
# concatenated once here (not per forward call).
# ----------------------------------------------------------------------------
def init_params(key, in_dim, out_dim, num_heads, use_bias=True):
    hd = out_dim * num_heads
    bound = 1.0 / (in_dim ** 0.5)
    keys = jax.random.split(key, 8)
    params = {}
    for i, name in enumerate(["q", "k", "v", "e"]):
        w = jax.random.uniform(keys[2 * i], (in_dim, hd), jnp.float32, -bound, bound)
        if use_bias:
            b = jax.random.uniform(keys[2 * i + 1], (hd,), jnp.float32, -bound, bound)
        else:
            b = jnp.zeros((hd,), jnp.float32)
        params["W" + name] = w
        params["b" + name] = b
    # NOTE: W_e / b_e correspond to proj_e, defined in __init__ but unused in the
    # reference forward pass; kept only for shape fidelity.
    params["Wqkv"] = jnp.concatenate([params["Wq"], params["Wk"], params["Wv"]], axis=1)
    params["bqkv"] = jnp.concatenate([params["bq"], params["bk"], params["bv"]], axis=0)
    return params


# ----------------------------------------------------------------------------
# Pure-JAX reference (numerical sanity check)
# ----------------------------------------------------------------------------
def _reference_forward(adj, h, params, num_heads, out_dim):
    H, D = num_heads, out_dim
    qkv = h @ params["Wqkv"] + params["bqkv"]
    q, k, v = jnp.split(qkv, 3, axis=1)
    q = q.reshape(-1, H, D)
    k = k.reshape(-1, H, D)
    v = v.reshape(-1, H, D)
    scale = 1.0 / (float(D) ** 0.5)
    score = k[:, None, :, :] * q[None, :, :, :] * scale                  # (u, v, H, D)
    e_out = score * adj[:, :, None, None]
    s = jnp.exp(jnp.clip(score.sum(-1), -5.0, 5.0)) * adj[:, :, None]    # (u, v, H)
    wv = jnp.einsum("uvh,uhd->vhd", s, v)
    z = s.sum(0)[:, :, None]
    h_out = wv / (z + 1e-6)
    return h_out, e_out


if __name__ == "__main__":
    N, IN_DIM, H, D = 8, 16, 2, 8   # nodes, in_dim, num_heads, out_dim (per head)

    key = jax.random.PRNGKey(0)
    k_h, k_e, k_adj, k_p = jax.random.split(key, 4)

    h = jax.random.normal(k_h, (N, IN_DIM), jnp.float32)
    e = jax.random.normal(k_e, (N * N, IN_DIM), jnp.float32)   # unused by forward
    adj = (jax.random.uniform(k_adj, (N, N)) < 0.5).astype(jnp.float32)
    adj = jnp.maximum(adj, jnp.eye(N, dtype=jnp.float32))       # ensure self-loops

    params = init_params(k_p, IN_DIM, D, H, use_bias=True)

    h_out, e_out = multi_head_attention_layer(adj, h, e, params, H, D)
    jax.block_until_ready((h_out, e_out))

    assert h_out.shape == (N, H, D)
    assert e_out.shape == (N, N, H, D)

    ref_h, ref_e = _reference_forward(adj, h, params, H, D)
    assert bool(jnp.allclose(e_out, ref_e, rtol=1e-2, atol=1e-2)), "e_out mismatch"
    assert bool(jnp.allclose(h_out, ref_h, rtol=1e-2, atol=1e-2)), "h_out mismatch"

    print("KERNEL_OK")
</pallas_src>

<mosaic_0001>
module attributes {stable_mosaic.version = 11 : i64} {
  func.func @_proj_kernel(%arg0: i32, %arg1: memref<8x16xf32, #tpu.memory_space<vmem>>, %arg2: memref<16x48xf32, #tpu.memory_space<vmem>>, %arg3: memref<1x48xf32, #tpu.memory_space<vmem>>, %arg4: memref<8x48xf32, #tpu.memory_space<vmem>>) attributes {dimension_semantics = [#tpu.dimension_semantics<parallel>], iteration_bounds = array<i64: 1>, scalar_prefetch = 0 : i64, scratch_operands = 0 : i64, tpu.core_type = #tpu.core_type<tc>, window_params = [{transform_indices = @transform_0, window_bounds = array<i64: 8, 16>}, {pipeline_mode = #tpu.pipeline_mode<synchronous>, transform_indices = @transform_1, window_bounds = array<i64: 16, 48>}, {pipeline_mode = #tpu.pipeline_mode<synchronous>, transform_indices = @transform_2, window_bounds = array<i64: 1, 48>}, {transform_indices = @transform_3, window_bounds = array<i64: 8, 48>}]} {
    %c0 = arith.constant 0 : index
    %c0_0 = arith.constant 0 : index
    %0 = vector.load %arg1[%c0, %c0_0] : memref<8x16xf32, #tpu.memory_space<vmem>>, vector<8x16xf32>
    %c0_1 = arith.constant 0 : index
    %c0_2 = arith.constant 0 : index
    %1 = vector.load %arg2[%c0_1, %c0_2] : memref<16x48xf32, #tpu.memory_space<vmem>>, vector<16x48xf32>
    %cst = arith.constant dense<0.000000e+00> : vector<8x48xf32>
    %2 = tpu.matmul %0, %1, %cst {dimension_numbers = #tpu.dot_dimension_numbers<[1], [0], [0], [1], [0, 0, 1, 1], [], []>} : vector<8x16xf32>, vector<16x48xf32>, vector<8x48xf32> -> vector<8x48xf32>
    %c0_3 = arith.constant 0 : index
    %c0_4 = arith.constant 0 : index
    %3 = vector.load %arg3[%c0_3, %c0_4] : memref<1x48xf32, #tpu.memory_space<vmem>>, vector<1x48xf32>
    %4 = vector.broadcast %3 : vector<1x48xf32> to vector<8x48xf32>
    %5 = arith.addf %2, %4 : vector<8x48xf32>
    %c0_5 = arith.constant 0 : index
    %c0_6 = arith.constant 0 : index
    %6 = vector.load %arg4[%c0_5, %c0_6] : memref<8x48xf32, #tpu.memory_space<vmem>>, vector<8x48xf32>
    tpu.vector_store %arg4[%c0_5, %c0_6], %5 {strides = array<i32>} : memref<8x48xf32, #tpu.memory_space<vmem>>, vector<8x48xf32>,
    return
  }
  func.func @transform_0(%arg0: i32) -> (i32, i32) {
    %c0_i32 = arith.constant 0 : i32
    %c0_i32_0 = arith.constant 0 : i32
    return %arg0, %c0_i32 : i32, i32
  }
  func.func @transform_1(%arg0: i32) -> (i32, i32) {
    %c0_i32 = arith.constant 0 : i32
    %c0_i32_0 = arith.constant 0 : i32
    %c0_i32_1 = arith.constant 0 : i32
    return %c0_i32, %c0_i32_0 : i32, i32
  }
  func.func @transform_2(%arg0: i32) -> (i32, i32) {
    %c0_i32 = arith.constant 0 : i32
    %c0_i32_0 = arith.constant 0 : i32
    %c0_i32_1 = arith.constant 0 : i32
    return %c0_i32, %c0_i32_0 : i32, i32
  }
  func.func @transform_3(%arg0: i32) -> (i32, i32) {
    %c0_i32 = arith.constant 0 : i32
    %c0_i32_0 = arith.constant 0 : i32
    return %arg0, %c0_i32 : i32, i32
  }
}

</mosaic_0001>

<llo_original>
// kernel: tpu_custom_call.1
$region0: #{tpu_custom_call.1}
  #allocation0 [shape = 'u32[]', space=smem, size = 0x4, offset = 0x4, fixed_abs, tag = 'smem constant byte address 0x4 - core index']
  #allocation1 [shape = 'u32[144,128]{1,0:T(1,128)}', space=vmem, size = 0x12000, scoped, tag = 'internal scratch']
  %s0 = inlined_call_operand.hbm [shape: f32[8,16], index: 0, kind: input, shape index: {}]
  %s1 = inlined_call_operand.hbm [shape: f32[16,48], index: 1, kind: input, shape index: {}]
  %s2 = inlined_call_operand.vmem [shape: f32[1,48], index: 2, kind: input, shape index: {}]
  %s3 = inlined_call_operand.hbm [shape: f32[8,48], index: 3, kind: output, shape index: {}]
  %s4 = sld [smem:[#allocation0]]
  $region30: #{tpu_custom_call.1} parent=0
    _
  %s6 = ssub.s32 1, %s4
  %s7 = scalar_select 0, %s6, %s4
  $region1: #{tpu_custom_call.1} parent=0
    #allocation2 [shape = 'u8[4096]{0}', space=vmem, size = 0x1000, scoped, tag = 'input window, operand 0, single buffered']
    #allocation3 [shape = 's32[1]{0}', space=sflag, size = 0x4, scoped, tag = 'scoped memory for tpu_custom_call.1']
    #allocation4 [shape = 's32[1]{0}', space=sflag, size = 0x4, scoped, tag = 'scoped memory for tpu_custom_call.1']
    #allocation5 [shape = 'u8[8192]{0}', space=vmem, size = 0x2000, scoped, tag = 'input window, operand 1, single buffered']
    #allocation6 [shape = 's32[1]{0}', space=sflag, size = 0x4, scoped, tag = 'scoped memory for tpu_custom_call.1']
    #allocation7 [shape = 'u8[4096]{0}', space=vmem, size = 0x1000, scoped, tag = 'output window, operand 0, single buffered']
    %8 = vsyncpa [#allocation3], 0
    %9 = vsyncpa [#allocation6], 0
    %10 = vsyncpa [#allocation4], 0
    // Predicated region
    $region2: #{tpu_custom_call.1} parent=1 // pred_check
      _
    $region3: #{tpu_custom_call.1} parent=1 // pred_check_branch
      %12 = sbr.rel (0) target = $region5
    $region4: #{tpu_custom_call.1} parent=1 // pred_region
      %s14 = ssub.s32 128, 128
      %15 = vsyncadd [#allocation3], %s14
      %s17 = sshll.u32 [#allocation2], 4
      %s18 = int_to_ptr.vmem [resolvable:$true] %s17
      %20 = dma.hbm_to_vmem [thread:$0]  %s0, 128, %s18, [#allocation3]
    $region5: #{tpu_custom_call.1} parent=1 // pred_fallthru
      _
    // Predicated region
    $region6: #{tpu_custom_call.1} parent=1 // pred_check
      _
    $region7: #{tpu_custom_call.1} parent=1 // pred_check_branch
      %22 = sbr.rel (0) target = $region9
    $region8: #{tpu_custom_call.1} parent=1 // pred_region
      %s24 = ssub.s32 256, 256
      %25 = vsyncadd [#allocation6], %s24
      %s26 = sshll.u32 [#allocation5], 4
      %s27 = int_to_ptr.vmem [resolvable:$true] %s26
      %32 = dma.hbm_to_vmem [thread:$0]  %s1, 256, %s27, [#allocation6], 128, 128, 8
    $region9: #{tpu_custom_call.1} parent=1 // pred_fallthru
      _
    // Predicated region
    $region10: #{tpu_custom_call.1} parent=1 // pred_check
      _
    $region11: #{tpu_custom_call.1} parent=1 // pred_check_branch
      %34 = sbr.rel (0) target = $region13
    $region12: #{tpu_custom_call.1} parent=1 // pred_region
      _
    $region13: #{tpu_custom_call.1} parent=1 // pred_fallthru
      _
    // Predicated region
    $region14: #{tpu_custom_call.1} parent=1 // pred_check
      _
    $region15: #{tpu_custom_call.1} parent=1 // pred_check_branch
      %36 = sbr.rel (0) target = $region17
    $region16: #{tpu_custom_call.1} parent=1 // pred_region
      %37 = dma.done [#allocation3], 128
    $region17: #{tpu_custom_call.1} parent=1 // pred_fallthru
      _
    // Predicated region
    $region18: #{tpu_custom_call.1} parent=1 // pred_check
      _
    $region19: #{tpu_custom_call.1} parent=1 // pred_check_branch
      %39 = sbr.rel (0) target = $region21
    $region20: #{tpu_custom_call.1} parent=1 // pred_region
      %40 = dma.done [#allocation6], 256
    $region21: #{tpu_custom_call.1} parent=1 // pred_fallthru
      _
    %v41 = vld [vmem:[#allocation2] sm:$0xff]
    %v42 = vld [vmem:[#allocation5] sm:$0xff]
    %v43 = vld [vmem:[#allocation5 + $0x8] sm:$0xff]
    %v44 = vld [vmem:[%s2] sm:$0x1]
    %v46 = vlaneseq
    %v47 = vshrl.u32 %v46, 7
    %v48 = vsub.s32 0, %v47
    %v49 = vrot.slane %v44, %v48
    %vm51 = vcmask 130048
    %v53 = vsel %vm51, %v41, 0
    %55 = vmatprep.subr.mxu0 0.0
    %56 = vmatpush1.msra.mxu0 0.0
    %57 = vmatprep.subr.mxu0 0.0
    %58 = vmatpush1.msra.mxu0 0.0
    %59 = vmatprep.subr.mxu0 0.0
    %60 = vmatpush1.msra.mxu0 0.0
    %61 = vmatprep.subr.mxu0 0.0
    %62 = vmatpush1.msra.mxu0 0.0
    %63 = vmatprep.subr.mxu0 0.0
    %64 = vmatpush1.msra.mxu0 0.0
    %65 = vmatprep.subr.mxu0 0.0
    %66 = vmatpush1.msra.mxu0 0.0
    %67 = vmatprep.subr.mxu0 0.0
    %68 = vmatpush1.msra.mxu0 0.0
    %69 = vmatprep.subr.mxu0 0.0
    %70 = vmatpush1.msra.mxu0 0.0
    %71 = vmatprep.subr.mxu0 0.0
    %72 = vmatpush1.msra.mxu0 0.0
    %73 = vmatprep.subr.mxu0 0.0
    %74 = vmatpush1.msra.mxu0 0.0
    %75 = vmatprep.subr.mxu0 0.0
    %76 = vmatpush1.msra.mxu0 0.0
    %77 = vmatprep.subr.mxu0 0.0
    %78 = vmatpush1.msra.mxu0 0.0
    %79 = vmatprep.subr.mxu0 0.0
    %80 = vmatpush1.msra.mxu0 0.0
    %81 = vmatprep.subr.mxu0 0.0
    %82 = vmatpush1.msra.mxu0 0.0
    %83 = vmatprep.subr.mxu0 0.0
    %84 = vmatpush1.msra.mxu0 %v43
    %85 = vmatprep.subr.mxu0 0.0
    %86 = vmatpush1.msra.mxu0 %v42
    %87 = vmatprep.subr.mxu0 0.0
    %88 = vmatpush2.msra.mxu0 0.0
    %89 = vmatprep.subr.mxu0 0.0
    %90 = vmatpush2.msra.mxu0 0.0
    %91 = vmatprep.subr.mxu0 0.0
    %92 = vmatpush2.msra.mxu0 0.0
    %93 = vmatprep.subr.mxu0 0.0
    %94 = vmatpush2.msra.mxu0 0.0
    %95 = vmatprep.subr.mxu0 0.0
    %96 = vmatpush2.msra.mxu0 0.0
    %97 = vmatprep.subr.mxu0 0.0
    %98 = vmatpush2.msra.mxu0 0.0
    %99 = vmatprep.subr.mxu0 0.0
    %100 = vmatpush2.msra.mxu0 0.0
    %101 = vmatprep.subr.mxu0 0.0
    %102 = vmatpush2.msra.mxu0 0.0
    %103 = vmatprep.subr.mxu0 0.0
    %104 = vmatpush2.msra.mxu0 0.0
    %105 = vmatprep.subr.mxu0 0.0
    %106 = vmatpush2.msra.mxu0 0.0
    %107 = vmatprep.subr.mxu0 0.0
    %108 = vmatpush2.msra.mxu0 0.0
    %109 = vmatprep.subr.mxu0 0.0
    %110 = vmatpush2.msra.mxu0 0.0
    %111 = vmatprep.subr.mxu0 0.0
    %112 = vmatpush2.msra.mxu0 0.0
    %113 = vmatprep.subr.mxu0 0.0
    %114 = vmatpush2.msra.mxu0 0.0
    %115 = vmatprep.subr.mxu0 0.0
    %116 = vmatpush2.msra.mxu0 0.0
    %117 = vmatprep.subr.mxu0 0.0
    %118 = vmatpush2.msra.mxu0 0.0
    %119 = vmatprep.mubr.f32.mxu0 0.0
    %120 = vmatmul.mubr.f32.gmra.mxu0 %v53
    %v121 = vpop.f32.mrf.mxu0
    %v122 = vadd.f32 %v49, %v121
    %v123 = vpop.f32.mrf.mxu0
    %124 = vdwg.mxu0
    %vm125 = vcmask 392192
    %126 = vst.msk [vmem:[#allocation7] sm:$0xff] %vm125, %v122
    // Predicated region
    $region22: #{tpu_custom_call.1} parent=1 // pred_check
      _
    $region23: #{tpu_custom_call.1} parent=1 // pred_check_branch
      %128 = sbr.rel (0) target = $region25
    $region24: #{tpu_custom_call.1} parent=1 // pred_region
      %s130 = ssub.s32 128, 128
      %131 = vsyncadd [#allocation4], %s130
      %s133 = sshll.u32 [#allocation7], 4
      %s134 = int_to_ptr.vmem [resolvable:$true] %s133
      %136 = dma.vmem_to_hbm [thread:$0]  %s134, 128, %s3, [#allocation4]
    $region25: #{tpu_custom_call.1} parent=1 // pred_fallthru
      _
    // Predicated region
    $region26: #{tpu_custom_call.1} parent=1 // pred_check
      _
    $region27: #{tpu_custom_call.1} parent=1 // pred_check_branch
      %138 = sbr.rel (0) target = $region29
    $region28: #{tpu_custom_call.1} parent=1 // pred_region
      %139 = dma.done [#allocation4], 128
    $region29: #{tpu_custom_call.1} parent=1 // pred_fallthru
      _
    %140 = vsyncpa [#allocation3], 1
    %141 = vsyncpa [#allocation6], 1
    %142 = vsyncpa [#allocation4], 1

</llo_original>
